<compile_context>
chip_gen: v6e
topology: v6e:2x2x1
jax: 0.10.0
libtpu: 0.0.40
codegen_flags: <defaults>
</compile_context>

<pallas_src>
import functools

import jax
import jax.numpy as jnp
from jax import lax
from jax.experimental import pallas as pl
from jax.experimental.pallas import tpu as pltpu


def _vmem_spec():
    return pl.BlockSpec(memory_space=pltpu.MemorySpace.VMEM)


def _l2_normalize(x):
    # f32 normalization (rsqrt on the EUP), matches CLIP's x / ||x||.
    return x * lax.rsqrt(jnp.sum(x * x, axis=-1, keepdims=True) + 1e-12)


# ---------------- fused kernel ----------------

def clip_fused_kernel(img_ref, w_img_ref, pooled_ref, w_txt_ref, golds_ref,
                      logits_ref, loss_ref, *,
                      num_labels, ensemble, logit_scale):
    # ---- image tower: [N_img, K] bf16 @ [K, D] bf16 -> f32 acc, L2 norm ----
    img_feat = _l2_normalize(
        jnp.dot(img_ref[...], w_img_ref[...],
                preferred_element_type=jnp.float32))            # [N_img, D] f32

    # ---- ensemble reduction on the VPU (label-major / ensemble-minor rows) --
    # Each label's ensemble members are a contiguous `ensemble`-row group of
    # img_feat; sum each group (single cross-sublane reduce per label, one
    # accumulator row live at a time) and stack the per-label rows.
    # TODO(synk): at real label counts replace this static per-label loop with
    # a gridded "arbitrary" reduction over the ensemble axis (accumulating VMEM
    # scratch), tiled per generation.
    groups = [
        jnp.sum(img_feat[l * ensemble:(l + 1) * ensemble, :],
                axis=0, keepdims=True)
        for l in range(num_labels)
    ]
    img_sum = jnp.concatenate(groups, axis=0)                   # [num_labels, D] f32

    # ---- text tower: pre-pooled [B, E] bf16 -> MXU -> f32 L2 norm -----------
    txt_feat = _l2_normalize(
        jnp.dot(pooled_ref[...], w_txt_ref[...],
                preferred_element_type=jnp.float32))            # [B, D] f32

    # ---- similarity: bf16 MXU operands, f32 accumulation, no transpose ------
    # Contract on the last dims of both operands; scale and the 1/ensemble
    # averaging factor are applied once in f32 afterwards.
    sim = lax.dot_general(txt_feat.astype(jnp.bfloat16),
                          img_sum.astype(jnp.bfloat16),
                          dimension_numbers=(((1,), (1,)), ((), ())),
                          preferred_element_type=jnp.float32)   # [B, num_labels]
    logits = (logit_scale / ensemble) * sim
    logits_ref[...] = logits

    # ---- cross entropy (mean reduction, matching F.cross_entropy) -----------
    b = logits.shape[0]
    m = jnp.max(logits, axis=-1, keepdims=True)                        # [B, 1]
    lse = m + jnp.log(jnp.sum(jnp.exp(logits - m), axis=-1,
                              keepdims=True))                          # [B, 1]
    col = lax.broadcasted_iota(jnp.int32, (b, num_labels), 1)
    gold = jnp.sum(jnp.where(col == golds_ref[...], logits, 0.0),
                   axis=-1, keepdims=True)                             # [B, 1]
    loss_ref[0, 0] = jnp.mean(lse - gold)


# ---------------- wrapper ----------------

def clip_template_forward(label_img, input_ids, attention_mask, golds,
                          params, num_labels, ensemble_size):
    """label_img and w_img / w_txt are expected to already be stored in bf16
    (done once at setup, not per call)."""
    n_img = label_img.shape[0]
    b = input_ids.shape[0]

    # Label-major contiguous flatten only (free in XLA) -- no HBM transpose of
    # the largest tensor; the ensemble regrouping is done on features in-kernel.
    img_flat = label_img.reshape(n_img, -1)                      # [N_img, K] bf16
    k = img_flat.shape[1]
    d = params["w_img"].shape[1]
    e_dim = params["w_txt"].shape[0]

    # Token-embedding gather + masked pooling stay in XLA next to the gather;
    # only the tiny pooled [B, E] tensor is DMA'd into the kernel.
    emb = params["token_emb"][input_ids]                         # [B, S, E] f32
    mask = attention_mask.astype(emb.dtype)[..., None]
    pooled = jnp.sum(emb * mask, axis=1).astype(jnp.bfloat16)    # [B, E] bf16

    golds2d = golds.astype(jnp.int32).reshape(b, 1)

    flops = 2 * n_img * k * d + 2 * b * e_dim * d + 2 * b * num_labels * d
    transcendentals = n_img + b + b * num_labels + b
    bytes_accessed = (img_flat.size * 2 + params["w_img"].size * 2 +
                      pooled.size * 2 + params["w_txt"].size * 2 +
                      golds2d.size * 4 + b * num_labels * 4 + 4)

    kernel = functools.partial(
        clip_fused_kernel,
        num_labels=num_labels,
        ensemble=ensemble_size,
        logit_scale=float(params["logit_scale"]),
    )

    logits, loss = pl.pallas_call(
        kernel,
        out_shape=(jax.ShapeDtypeStruct((b, num_labels), jnp.float32),
                   jax.ShapeDtypeStruct((1, 1), jnp.float32)),
        in_specs=[_vmem_spec()] * 5,
        out_specs=(_vmem_spec(),
                   pl.BlockSpec(memory_space=pltpu.MemorySpace.SMEM)),
        compiler_params=pltpu.CompilerParams(
            # Toy shapes fit trivially; re-derive per generation when gridding
            # (v7x: 64 MiB physical, v5e default scoped limit is only 16 MiB).
            vmem_limit_bytes=32 * 1024 * 1024),
        cost_estimate=pl.CostEstimate(flops=int(flops),
                                      transcendentals=int(transcendentals),
                                      bytes_accessed=int(bytes_accessed)),
    )(img_flat, params["w_img"], pooled, params["w_txt"], golds2d)

    return {"logits": logits, "loss": loss[0, 0]}


# ---------------- pure-JAX reference (tolerance check) ----------------

def _reference_forward(label_img, input_ids, attention_mask, golds,
                       params, num_labels, ensemble_size):
    n_img = label_img.shape[0]
    img = label_img.reshape(n_img, -1).astype(jnp.float32)
    img_feat = img @ params["w_img"].astype(jnp.float32)
    img_feat = img_feat / jnp.linalg.norm(img_feat, axis=-1, keepdims=True)

    emb = params["token_emb"][input_ids].astype(jnp.float32)
    pooled = jnp.sum(emb * attention_mask.astype(jnp.float32)[..., None], axis=1)
    txt_feat = pooled @ params["w_txt"].astype(jnp.float32)
    txt_feat = txt_feat / jnp.linalg.norm(txt_feat, axis=-1, keepdims=True)

    logits_per_text = float(params["logit_scale"]) * (txt_feat @ img_feat.T)
    logits = jnp.mean(
        logits_per_text.reshape(-1, num_labels, ensemble_size), axis=-1)

    lse = jax.nn.logsumexp(logits, axis=-1)
    gold = jnp.take_along_axis(logits, golds[:, None].astype(jnp.int32), axis=1)[:, 0]
    loss = jnp.mean(lse - gold)
    return logits, loss


if __name__ == "__main__":
    # Small shapes consistent with the module's forward.
    B, S = 2, 8                 # text batch, sequence length
    V, E, D = 32, 32, 128       # vocab, token-embed dim, joint embed dim (lane-full)
    NUM_LABELS, ENSEMBLE = 4, 2
    C, H, W = 3, 16, 16         # K = C*H*W = 768 (multiple of 128)
    N_IMG = NUM_LABELS * ENSEMBLE

    key = jax.random.PRNGKey(0)
    k1, k2, k3, k4, k5, k6 = jax.random.split(key, 6)

    # Parameters prepared ONCE in the dtypes the kernel consumes (no per-call casts).
    label_img = jax.random.normal(
        k1, (N_IMG, C, H, W), jnp.float32).astype(jnp.bfloat16)   # nn.Parameter
    params = {
        "w_img": (0.02 * jax.random.normal(k4, (C * H * W, D), jnp.float32)
                  ).astype(jnp.bfloat16),
        "token_emb": 0.02 * jax.random.normal(k5, (V, E), jnp.float32),
        "w_txt": (0.02 * jax.random.normal(k6, (E, D), jnp.float32)
                  ).astype(jnp.bfloat16),
        "logit_scale": float(1.0 / 0.07),   # exp(log(1/0.07)), CLIP init
    }

    # Example inputs.
    input_ids = jax.random.randint(k2, (B, S), 0, V)
    attention_mask = jnp.ones((B, S), jnp.int32)
    golds = jax.random.randint(k3, (B,), 0, NUM_LABELS)

    out = clip_template_forward(label_img, input_ids, attention_mask, golds,
                                params, NUM_LABELS, ENSEMBLE)
    jax.block_until_ready(out)

    assert out["logits"].shape == (B, NUM_LABELS)
    assert out["loss"].shape == ()
    assert bool(jnp.isfinite(out["loss"]))
    assert bool(jnp.all(jnp.isfinite(out["logits"])))

    # Tolerance-based check against an f32 pure-JAX reference (bf16 MXU path).
    ref_logits, ref_loss = _reference_forward(
        label_img, input_ids, attention_mask, golds, params, NUM_LABELS, ENSEMBLE)
    assert bool(jnp.allclose(out["logits"], ref_logits, atol=5e-2, rtol=5e-2))
    assert bool(jnp.allclose(out["loss"], ref_loss, atol=5e-2, rtol=5e-2))

    print("KERNEL_OK")
</pallas_src>

<mosaic_0001>
module attributes {stable_mosaic.version = 11 : i64} {
  func.func @clip_fused_kernel(%arg0: memref<8x768xbf16, #tpu.memory_space<vmem>>, %arg1: memref<768x128xbf16, #tpu.memory_space<vmem>>, %arg2: memref<2x32xbf16, #tpu.memory_space<vmem>>, %arg3: memref<32x128xbf16, #tpu.memory_space<vmem>>, %arg4: memref<2x1xi32, #tpu.memory_space<vmem>>, %arg5: memref<2x4xf32, #tpu.memory_space<vmem>>, %arg6: memref<1x1xf32, #tpu.memory_space<smem>>) attributes {dimension_semantics = [], scalar_prefetch = 0 : i64, scratch_operands = 0 : i64, tpu.core_type = #tpu.core_type<tc>} {
    %c0 = arith.constant 0 : index
    %c0_0 = arith.constant 0 : index
    %0 = vector.load %arg0[%c0, %c0_0] : memref<8x768xbf16, #tpu.memory_space<vmem>>, vector<8x768xbf16>
    %c0_1 = arith.constant 0 : index
    %c0_2 = arith.constant 0 : index
    %1 = vector.load %arg1[%c0_1, %c0_2] : memref<768x128xbf16, #tpu.memory_space<vmem>>, vector<768x128xbf16>
    %cst = arith.constant dense<0.000000e+00> : vector<8x128xf32>
    %2 = tpu.matmul %0, %1, %cst {dimension_numbers = #tpu.dot_dimension_numbers<[1], [0], [0], [1], [0, 0, 1, 1], [], []>} : vector<8x768xbf16>, vector<768x128xbf16>, vector<8x128xf32> -> vector<8x128xf32>
    %3 = arith.mulf %2, %2 : vector<8x128xf32>
    %cst_3 = arith.constant dense<0.000000e+00> : vector<8xf32>
    %4 = vector.multi_reduction <add>, %3, %cst_3 [1] : vector<8x128xf32> to vector<8xf32>
    %5 = vector.shape_cast %4 : vector<8xf32> to vector<8x1xf32>
    %cst_4 = arith.constant 9.99999996E-13 : f32
    %6 = vector.broadcast %cst_4 : f32 to vector<8x1xf32>
    %7 = arith.addf %5, %6 : vector<8x1xf32>
    %8 = math.rsqrt %7 : vector<8x1xf32>
    %9 = vector.broadcast %8 : vector<8x1xf32> to vector<8x128xf32>
    %10 = arith.mulf %2, %9 : vector<8x128xf32>
    %11 = vector.extract_strided_slice %10 {offsets = [0, 0], sizes = [2, 128], strides = [1, 1]} : vector<8x128xf32> to vector<2x128xf32>
    %cst_5 = arith.constant dense<0.000000e+00> : vector<128xf32>
    %12 = vector.multi_reduction <add>, %11, %cst_5 [0] : vector<2x128xf32> to vector<128xf32>
    %13 = vector.shape_cast %12 : vector<128xf32> to vector<1x128xf32>
    %14 = vector.extract_strided_slice %10 {offsets = [2, 0], sizes = [2, 128], strides = [1, 1]} : vector<8x128xf32> to vector<2x128xf32>
    %cst_6 = arith.constant dense<0.000000e+00> : vector<128xf32>
    %15 = vector.multi_reduction <add>, %14, %cst_6 [0] : vector<2x128xf32> to vector<128xf32>
    %16 = vector.shape_cast %15 : vector<128xf32> to vector<1x128xf32>
    %17 = vector.extract_strided_slice %10 {offsets = [4, 0], sizes = [2, 128], strides = [1, 1]} : vector<8x128xf32> to vector<2x128xf32>
    %cst_7 = arith.constant dense<0.000000e+00> : vector<128xf32>
    %18 = vector.multi_reduction <add>, %17, %cst_7 [0] : vector<2x128xf32> to vector<128xf32>
    %19 = vector.shape_cast %18 : vector<128xf32> to vector<1x128xf32>
    %20 = vector.extract_strided_slice %10 {offsets = [6, 0], sizes = [2, 128], strides = [1, 1]} : vector<8x128xf32> to vector<2x128xf32>
    %cst_8 = arith.constant dense<0.000000e+00> : vector<128xf32>
    %21 = vector.multi_reduction <add>, %20, %cst_8 [0] : vector<2x128xf32> to vector<128xf32>
    %22 = vector.shape_cast %21 : vector<128xf32> to vector<1x128xf32>
    %23 = tpu.concatenate %13, %16, %19, %22 in 0 : vector<1x128xf32>, vector<1x128xf32>, vector<1x128xf32>, vector<1x128xf32> -> vector<4x128xf32>
    %c0_9 = arith.constant 0 : index
    %c0_10 = arith.constant 0 : index
    %24 = vector.load %arg2[%c0_9, %c0_10] : memref<2x32xbf16, #tpu.memory_space<vmem>>, vector<2x32xbf16>
    %c0_11 = arith.constant 0 : index
    %c0_12 = arith.constant 0 : index
    %25 = vector.load %arg3[%c0_11, %c0_12] : memref<32x128xbf16, #tpu.memory_space<vmem>>, vector<32x128xbf16>
    %cst_13 = arith.constant dense<0.000000e+00> : vector<2x128xf32>
    %26 = tpu.matmul %24, %25, %cst_13 {dimension_numbers = #tpu.dot_dimension_numbers<[1], [0], [0], [1], [0, 0, 1, 1], [], []>} : vector<2x32xbf16>, vector<32x128xbf16>, vector<2x128xf32> -> vector<2x128xf32>
    %27 = arith.mulf %26, %26 : vector<2x128xf32>
    %cst_14 = arith.constant dense<0.000000e+00> : vector<2xf32>
    %28 = vector.multi_reduction <add>, %27, %cst_14 [1] : vector<2x128xf32> to vector<2xf32>
    %29 = vector.shape_cast %28 : vector<2xf32> to vector<2x1xf32>
    %cst_15 = arith.constant 9.99999996E-13 : f32
    %30 = vector.broadcast %cst_15 : f32 to vector<2x1xf32>
    %31 = arith.addf %29, %30 : vector<2x1xf32>
    %32 = math.rsqrt %31 : vector<2x1xf32>
    %33 = vector.broadcast %32 : vector<2x1xf32> to vector<2x128xf32>
    %34 = arith.mulf %26, %33 : vector<2x128xf32>
    %35 = arith.truncf %34 : vector<2x128xf32> to vector<2x128xbf16>
    %36 = arith.truncf %23 : vector<4x128xf32> to vector<4x128xbf16>
    %cst_16 = arith.constant dense<0.000000e+00> : vector<2x4xf32>
    %37 = tpu.matmul %35, %36, %cst_16 {dimension_numbers = #tpu.dot_dimension_numbers<[1], [1], [0], [0], [0, 0, 1, 0], [], []>} : vector<2x128xbf16>, vector<4x128xbf16>, vector<2x4xf32> -> vector<2x4xf32>
    %cst_17 = arith.constant 7.14285707 : f32
    %38 = vector.broadcast %cst_17 : f32 to vector<2x4xf32>
    %39 = arith.mulf %38, %37 : vector<2x4xf32>
    %c0_18 = arith.constant 0 : index
    %c0_19 = arith.constant 0 : index
    %40 = vector.load %arg5[%c0_18, %c0_19] : memref<2x4xf32, #tpu.memory_space<vmem>>, vector<2x4xf32>
    tpu.vector_store %arg5[%c0_18, %c0_19], %39 {strides = array<i32>} : memref<2x4xf32, #tpu.memory_space<vmem>>, vector<2x4xf32>,
    %cst_20 = arith.constant dense<0xFF800000> : vector<2xf32>
    %41 = vector.multi_reduction <maximumf>, %39, %cst_20 [1] : vector<2x4xf32> to vector<2xf32>
    %42 = vector.shape_cast %41 : vector<2xf32> to vector<2x1xf32>
    %43 = vector.broadcast %42 : vector<2x1xf32> to vector<2x4xf32>
    %44 = arith.subf %39, %43 : vector<2x4xf32>
    %45 = math.exp %44 : vector<2x4xf32>
    %cst_21 = arith.constant dense<0.000000e+00> : vector<2xf32>
    %46 = vector.multi_reduction <add>, %45, %cst_21 [1] : vector<2x4xf32> to vector<2xf32>
    %47 = vector.shape_cast %46 : vector<2xf32> to vector<2x1xf32>
    %48 = math.log %47 : vector<2x1xf32>
    %49 = arith.addf %42, %48 : vector<2x1xf32>
    %50 = tpu.iota {dimensions = array<i32: 1>} : vector<2x4xi32>
    %c0_22 = arith.constant 0 : index
    %c0_23 = arith.constant 0 : index
    %51 = vector.load %arg4[%c0_22, %c0_23] : memref<2x1xi32, #tpu.memory_space<vmem>>, vector<2x1xi32>
    %52 = vector.broadcast %51 : vector<2x1xi32> to vector<2x4xi32>
    %53 = arith.cmpi eq, %50, %52 : vector<2x4xi32>
    %cst_24 = arith.constant 0.000000e+00 : f32
    %54 = vector.broadcast %cst_24 : f32 to vector<2x4xf32>
    %55 = arith.select %53, %39, %54 : vector<2x4xi1>, vector<2x4xf32>
    %cst_25 = arith.constant dense<0.000000e+00> : vector<2xf32>
    %56 = vector.multi_reduction <add>, %55, %cst_25 [1] : vector<2x4xf32> to vector<2xf32>
    %57 = vector.shape_cast %56 : vector<2xf32> to vector<2x1xf32>
    %58 = arith.subf %49, %57 : vector<2x1xf32>
    %59 = vector.shape_cast %58 : vector<2x1xf32> to vector<1x2x1xf32>
    %cst_26 = arith.constant dense<0.000000e+00> : vector<1xf32>
    %60 = vector.multi_reduction <add>, %59, %cst_26 [1, 2] : vector<1x2x1xf32> to vector<1xf32>
    %61 = vector.shape_cast %60 : vector<1xf32> to vector<1x1x1xf32>
    %62 = vector.extract %61[0, 0, 0] : f32 from vector<1x1x1xf32>
    %cst_27 = arith.constant 2.000000e+00 : f32
    %63 = arith.divf %62, %cst_27 : f32
    %c0_28 = arith.constant 0 : index
    %c0_29 = arith.constant 0 : index
    %64 = memref.load %arg6[%c0_28, %c0_29] : memref<1x1xf32, #tpu.memory_space<smem>>
    memref.store %63, %arg6[%c0_28, %c0_29] : memref<1x1xf32, #tpu.memory_space<smem>>
    return
  }
}

</mosaic_0001>

<llo_original>
// kernel: tpu_custom_call.1
$region0: #{tpu_custom_call.1}
  #allocation0 [shape = 'u32[]', space=smem, size = 0x4, offset = 0x4, fixed_abs, tag = 'smem constant byte address 0x4 - core index']
  #allocation1 [shape = 'u32[144,128]{1,0:T(1,128)}', space=vmem, size = 0x12000, scoped, tag = 'internal scratch']
  %s0 = inlined_call_operand.hbm [shape: bf16[8,768], index: 0, kind: input, shape index: {}]
  %s1 = inlined_call_operand.hbm [shape: bf16[768,128], index: 1, kind: input, shape index: {}]
  %s2 = inlined_call_operand.vmem [shape: bf16[2,32], index: 2, kind: input, shape index: {}]
  %s3 = inlined_call_operand.hbm [shape: bf16[32,128], index: 3, kind: input, shape index: {}]
  %s4 = inlined_call_operand.vmem [shape: s32[2,1], index: 4, kind: input, shape index: {}]
  %s5 = inlined_call_operand.hbm [shape: f32[2,4], index: 5, kind: output, shape index: {0}]
  %s6 = inlined_call_operand.hbm [shape: f32[1,1], index: 6, kind: output, shape index: {1}]
  %7 = xla_tuple %s5, %s6
  %s8 = sld [smem:[#allocation0]]
  $region50: #{tpu_custom_call.1} parent=0
    _
  %s10 = ssub.s32 1, %s8
  %s11 = scalar_select 0, %s10, %s8
  $region1: #{tpu_custom_call.1} parent=0
    #allocation2 [shape = 'u8[12288]{0}', space=vmem, size = 0x3000, scoped, tag = 'input window, operand 0, single buffered']
    #allocation3 [shape = 's32[1]{0}', space=sflag, size = 0x4, scoped, tag = 'scoped memory for tpu_custom_call.1']
    #allocation4 [shape = 's32[1]{0}', space=sflag, size = 0x4, scoped, tag = 'scoped memory for tpu_custom_call.1']
    #allocation5 [shape = 's32[1]{0}', space=sflag, size = 0x4, scoped, tag = 'scoped memory for tpu_custom_call.1']
    #allocation6 [shape = 'u8[196608]{0}', space=vmem, size = 0x30000, scoped, tag = 'input window, operand 1, single buffered']
    #allocation7 [shape = 's32[1]{0}', space=sflag, size = 0x4, scoped, tag = 'scoped memory for tpu_custom_call.1']
    #allocation8 [shape = 'u8[8192]{0}', space=vmem, size = 0x2000, scoped, tag = 'input window, operand 3, single buffered']
    #allocation9 [shape = 'u8[1024]{0}', space=vmem, size = 0x400, scoped, tag = 'output window, operand 0, single buffered']
    #allocation10 [shape = 'u8[512]{0}', space=smem, size = 0x200, scoped, tag = 'output window, operand 1, single buffered']
    %12 = vsyncpa [#allocation3], 0
    %13 = vsyncpa [#allocation7], 0
    %14 = vsyncpa [#allocation4], 0
    %15 = vsyncpa [#allocation5], 0
    // Predicated region
    $region2: #{tpu_custom_call.1} parent=1 // pred_check
      _
    $region3: #{tpu_custom_call.1} parent=1 // pred_check_branch
      %17 = sbr.rel (0) target = $region5
    $region4: #{tpu_custom_call.1} parent=1 // pred_region
      %s19 = ssub.s32 384, 384
      %20 = vsyncadd [#allocation3], %s19
      %s22 = sshll.u32 [#allocation2], 4
      %s23 = int_to_ptr.vmem [resolvable:$true] %s22
      %25 = dma.hbm_to_vmem [thread:$0]  %s0, 384, %s23, [#allocation3]
    $region5: #{tpu_custom_call.1} parent=1 // pred_fallthru
      _
    // Predicated region
    $region6: #{tpu_custom_call.1} parent=1 // pred_check
      _
    $region7: #{tpu_custom_call.1} parent=1 // pred_check_branch
      %27 = sbr.rel (0) target = $region9
    $region8: #{tpu_custom_call.1} parent=1 // pred_region
      %s29 = ssub.s32 6144, 6144
      %30 = vsyncadd [#allocation7], %s29
      %s31 = sshll.u32 [#allocation6], 4
      %s32 = int_to_ptr.vmem [resolvable:$true] %s31
      %37 = dma.hbm_to_vmem [thread:$0]  %s1, 6144, %s32, [#allocation7], 64, 64, 4
    $region9: #{tpu_custom_call.1} parent=1 // pred_fallthru
      _
    // Predicated region
    $region10: #{tpu_custom_call.1} parent=1 // pred_check
      _
    $region11: #{tpu_custom_call.1} parent=1 // pred_check_branch
      %39 = sbr.rel (0) target = $region13
    $region12: #{tpu_custom_call.1} parent=1 // pred_region
      _
    $region13: #{tpu_custom_call.1} parent=1 // pred_fallthru
      _
    // Predicated region
    $region14: #{tpu_custom_call.1} parent=1 // pred_check
      _
    $region15: #{tpu_custom_call.1} parent=1 // pred_check_branch
      %41 = sbr.rel (0) target = $region17
    $region16: #{tpu_custom_call.1} parent=1 // pred_region
      %s43 = ssub.s32 256, 256
      %44 = vsyncadd [#allocation7], %s43
      %s45 = sshll.u32 [#allocation8], 4
      %s46 = int_to_ptr.vmem [resolvable:$true] %s45
      %51 = dma.hbm_to_vmem [thread:$0]  %s3, 256, %s46, [#allocation7], 64, 64, 4
    $region17: #{tpu_custom_call.1} parent=1 // pred_fallthru
      _
    // Predicated region
    $region18: #{tpu_custom_call.1} parent=1 // pred_check
      _
    $region19: #{tpu_custom_call.1} parent=1 // pred_check_branch
      %53 = sbr.rel (0) target = $region21
    $region20: #{tpu_custom_call.1} parent=1 // pred_region
      _
    $region21: #{tpu_custom_call.1} parent=1 // pred_fallthru
      _
    // Predicated region
    $region22: #{tpu_custom_call.1} parent=1 // pred_check
      _
    $region23: #{tpu_custom_call.1} parent=1 // pred_check_branch
      %55 = sbr.rel (0) target = $region25
    $region24: #{tpu_custom_call.1} parent=1 // pred_region
      %56 = dma.done [#allocation3], 384
    $region25: #{tpu_custom_call.1} parent=1 // pred_fallthru
      _
    // Predicated region
    $region26: #{tpu_custom_call.1} parent=1 // pred_check
      _
    $region27: #{tpu_custom_call.1} parent=1 // pred_check_branch
      %58 = sbr.rel (0) target = $region29
    $region28: #{tpu_custom_call.1} parent=1 // pred_region
      %59 = dma.done [#allocation7], 6144
    $region29: #{tpu_custom_call.1} parent=1 // pred_fallthru
      _
    // Predicated region
    $region30: #{tpu_custom_call.1} parent=1 // pred_check
      _
    $region31: #{tpu_custom_call.1} parent=1 // pred_check_branch
      %61 = sbr.rel (0) target = $region33
    $region32: #{tpu_custom_call.1} parent=1 // pred_region
      %62 = dma.done [#allocation7], 256
    $region33: #{tpu_custom_call.1} parent=1 // pred_fallthru
      _
    %v64 = vld [vmem:[#allocation2] sm:$0xff]
    %v65 = vld [vmem:[#allocation2 + $0x8] sm:$0xff]
    %v66 = vld [vmem:[#allocation2 + $0x10] sm:$0xff]
    %v67 = vld [vmem:[#allocation6] sm:$0xf]
    %v68 = vld [vmem:[#allocation6 + $0x4] sm:$0xf]
    %v69 = vld [vmem:[#allocation6 + $0x8] sm:$0xf]
    %v70 = vld [vmem:[#allocation6 + $0xc] sm:$0xf]
    %v71 = vld [vmem:[#allocation6 + $0x10] sm:$0xf]
    %v72 = vld [vmem:[#allocation6 + $0x14] sm:$0xf]
    %v73 = vld [vmem:[#allocation6 + $0x18] sm:$0xf]
    %v74 = vld [vmem:[#allocation6 + $0x1c] sm:$0xf]
    %v75 = vld [vmem:[#allocation6 + $0x20] sm:$0xf]
    %v76 = vld [vmem:[#allocation6 + $0x24] sm:$0xf]
    %v77 = vld [vmem:[#allocation6 + $0x28] sm:$0xf]
    %v78 = vld [vmem:[#allocation6 + $0x2c] sm:$0xf]
    %v79 = vld [vmem:[#allocation6 + $0x30] sm:$0xf]
    %v80 = vld [vmem:[#allocation6 + $0x34] sm:$0xf]
    %v81 = vld [vmem:[#allocation6 + $0x38] sm:$0xf]
    %v82 = vld [vmem:[#allocation6 + $0x3c] sm:$0xf]
    %v83 = vld [vmem:[#allocation6 + $0x40] sm:$0xf]
    %v84 = vld [vmem:[#allocation6 + $0x44] sm:$0xf]
    %v85 = vld [vmem:[#allocation6 + $0x48] sm:$0xf]
    %v86 = vld [vmem:[#allocation6 + $0x4c] sm:$0xf]
    %v87 = vld [vmem:[#allocation6 + $0x50] sm:$0xf]
    %v88 = vld [vmem:[#allocation6 + $0x54] sm:$0xf]
    %v89 = vld [vmem:[#allocation6 + $0x58] sm:$0xf]
    %v90 = vld [vmem:[#allocation6 + $0x5c] sm:$0xf]
    %v91 = vld [vmem:[#allocation6 + $0x60] sm:$0xf]
    %v92 = vld [vmem:[#allocation6 + $0x64] sm:$0xf]
    %v93 = vld [vmem:[#allocation6 + $0x68] sm:$0xf]
    %v94 = vld [vmem:[#allocation6 + $0x6c] sm:$0xf]
    %v95 = vld [vmem:[#allocation6 + $0x70] sm:$0xf]
    %v96 = vld [vmem:[#allocation6 + $0x74] sm:$0xf]
    %v97 = vld [vmem:[#allocation6 + $0x78] sm:$0xf]
    %v98 = vld [vmem:[#allocation6 + $0x7c] sm:$0xf]
    %v99 = vld [vmem:[#allocation6 + $0x80] sm:$0xf]
    %v100 = vld [vmem:[#allocation6 + $0x84] sm:$0xf]
    %v101 = vld [vmem:[#allocation6 + $0x88] sm:$0xf]
    %v102 = vld [vmem:[#allocation6 + $0x8c] sm:$0xf]
    %v103 = vld [vmem:[#allocation6 + $0x90] sm:$0xf]
    %v104 = vld [vmem:[#allocation6 + $0x94] sm:$0xf]
    %v105 = vld [vmem:[#allocation6 + $0x98] sm:$0xf]
    %v106 = vld [vmem:[#allocation6 + $0x9c] sm:$0xf]
    %v107 = vld [vmem:[#allocation6 + $0xa0] sm:$0xf]
    %v108 = vld [vmem:[#allocation6 + $0xa4] sm:$0xf]
    %v109 = vld [vmem:[#allocation6 + $0xa8] sm:$0xf]
    %v110 = vld [vmem:[#allocation6 + $0xac] sm:$0xf]
    %v111 = vld [vmem:[#allocation6 + $0xb0] sm:$0xf]
    %v112 = vld [vmem:[#allocation6 + $0xb4] sm:$0xf]
    %v113 = vld [vmem:[#allocation6 + $0xb8] sm:$0xf]
    %v114 = vld [vmem:[#allocation6 + $0xbc] sm:$0xf]
    %v115 = vld [vmem:[#allocation6 + $0xc0] sm:$0xf]
    %v116 = vld [vmem:[#allocation6 + $0xc4] sm:$0xf]
    %v117 = vld [vmem:[#allocation6 + $0xc8] sm:$0xf]
    %v118 = vld [vmem:[#allocation6 + $0xcc] sm:$0xf]
    %v119 = vld [vmem:[#allocation6 + $0xd0] sm:$0xf]
    %v120 = vld [vmem:[#allocation6 + $0xd4] sm:$0xf]
    %v121 = vld [vmem:[#allocation6 + $0xd8] sm:$0xf]
    %v122 = vld [vmem:[#allocation6 + $0xdc] sm:$0xf]
    %v123 = vld [vmem:[#allocation6 + $0xe0] sm:$0xf]
    %v124 = vld [vmem:[#allocation6 + $0xe4] sm:$0xf]
    %v125 = vld [vmem:[#allocation6 + $0xe8] sm:$0xf]
    %v126 = vld [vmem:[#allocation6 + $0xec] sm:$0xf]
    %v127 = vld [vmem:[#allocation6 + $0xf0] sm:$0xf]
    %v128 = vld [vmem:[#allocation6 + $0xf4] sm:$0xf]
    %v129 = vld [vmem:[#allocation6 + $0xf8] sm:$0xf]
    %v130 = vld [vmem:[#allocation6 + $0xfc] sm:$0xf]
    %v131 = vld [vmem:[#allocation6 + $0x100] sm:$0xf]
    %v132 = vld [vmem:[#allocation6 + $0x104] sm:$0xf]
    %v133 = vld [vmem:[#allocation6 + $0x108] sm:$0xf]
    %v134 = vld [vmem:[#allocation6 + $0x10c] sm:$0xf]
    %v135 = vld [vmem:[#allocation6 + $0x110] sm:$0xf]
    %v136 = vld [vmem:[#allocation6 + $0x114] sm:$0xf]
    %v137 = vld [vmem:[#allocation6 + $0x118] sm:$0xf]
    %v138 = vld [vmem:[#allocation6 + $0x11c] sm:$0xf]
    %v139 = vld [vmem:[#allocation6 + $0x120] sm:$0xf]
    %v140 = vld [vmem:[#allocation6 + $0x124] sm:$0xf]
    %v141 = vld [vmem:[#allocation6 + $0x128] sm:$0xf]
    %v142 = vld [vmem:[#allocation6 + $0x12c] sm:$0xf]
    %v143 = vld [vmem:[#allocation6 + $0x130] sm:$0xf]
    %v144 = vld [vmem:[#allocation6 + $0x134] sm:$0xf]
    %v145 = vld [vmem:[#allocation6 + $0x138] sm:$0xf]
    %v146 = vld [vmem:[#allocation6 + $0x13c] sm:$0xf]
    %v147 = vld [vmem:[#allocation6 + $0x140] sm:$0xf]
    %v148 = vld [vmem:[#allocation6 + $0x144] sm:$0xf]
    %v149 = vld [vmem:[#allocation6 + $0x148] sm:$0xf]
    %v150 = vld [vmem:[#allocation6 + $0x14c] sm:$0xf]
    %v151 = vld [vmem:[#allocation6 + $0x150] sm:$0xf]
    %v152 = vld [vmem:[#allocation6 + $0x154] sm:$0xf]
    %v153 = vld [vmem:[#allocation6 + $0x158] sm:$0xf]
    %v154 = vld [vmem:[#allocation6 + $0x15c] sm:$0xf]
    %v155 = vld [vmem:[#allocation6 + $0x160] sm:$0xf]
    %v156 = vld [vmem:[#allocation6 + $0x164] sm:$0xf]
    %v157 = vld [vmem:[#allocation6 + $0x168] sm:$0xf]
    %v158 = vld [vmem:[#allocation6 + $0x16c] sm:$0xf]
    %v159 = vld [vmem:[#allocation6 + $0x170] sm:$0xf]
    %v160 = vld [vmem:[#allocation6 + $0x174] sm:$0xf]
    %v161 = vld [vmem:[#allocation6 + $0x178] sm:$0xf]
    %v162 = vld [vmem:[#allocation6 + $0x17c] sm:$0xf]
    %v166 = vunpack.c.l.b16 %v64
    %v167 = vunpack.c.h.b16 %v64
    %v168 = vunpack.c.l.b16 %v65
    %v169 = vunpack.c.h.b16 %v65
    %v170 = vunpack.c.l.b16 %v66
    %v171 = vunpack.c.h.b16 %v66
    %v172 = vpack.c.b16 %v166, %v166
    %v173 = vpack.c.b16 %v167, %v167
    %v174 = vpack.c.b16 %v168, %v168
    %v175 = vpack.c.b16 %v169, %v169
    %v176 = vpack.c.b16 %v170, %v170
    %v177 = vpack.c.b16 %v171, %v171
    %v280 = vunpack.c.l.b16 %v67
    %v281 = vunpack.c.l.b16 %v68
    %v282 = vunpack.c.l.b16 %v69
    %v283 = vunpack.c.l.b16 %v70
    %v284 = vunpack.c.l.b16 %v71
    %v285 = vunpack.c.l.b16 %v72
    %v286 = vunpack.c.l.b16 %v73
    %v287 = vunpack.c.l.b16 %v74
    %v288 = vunpack.c.l.b16 %v75
    %v289 = vunpack.c.l.b16 %v76
    %v290 = vunpack.c.l.b16 %v77
    %v291 = vunpack.c.l.b16 %v78
    %v292 = vunpack.c.l.b16 %v79
    %v293 = vunpack.c.l.b16 %v80
    %v294 = vunpack.c.l.b16 %v81
    %v295 = vunpack.c.l.b16 %v82
    %v296 = vunpack.c.l.b16 %v83
    %v297 = vunpack.c.l.b16 %v84
    %v298 = vunpack.c.l.b16 %v85
    %v299 = vunpack.c.l.b16 %v86
    %v300 = vunpack.c.l.b16 %v87
    %v301 = vunpack.c.l.b16 %v88
    %v302 = vunpack.c.l.b16 %v89
    %v303 = vunpack.c.l.b16 %v90
    %v304 = vunpack.c.l.b16 %v91
    %v305 = vunpack.c.l.b16 %v92
    %v306 = vunpack.c.l.b16 %v93
    %v307 = vunpack.c.l.b16 %v94
    %v308 = vunpack.c.l.b16 %v95
    %v309 = vunpack.c.l.b16 %v96
    %v310 = vunpack.c.l.b16 %v97
    %v311 = vunpack.c.l.b16 %v98
    %v312 = vunpack.c.l.b16 %v99
    %v313 = vunpack.c.l.b16 %v100
    %v314 = vunpack.c.l.b16 %v101
    %v315 = vunpack.c.l.b16 %v102
    %v316 = vunpack.c.l.b16 %v103
    %v317 = vunpack.c.l.b16 %v104
    %v318 = vunpack.c.l.b16 %v105
    %v319 = vunpack.c.l.b16 %v106
    %v320 = vunpack.c.l.b16 %v107
    %v321 = vunpack.c.l.b16 %v108
    %v322 = vunpack.c.l.b16 %v109
    %v323 = vunpack.c.l.b16 %v110
    %v324 = vunpack.c.l.b16 %v111
    %v325 = vunpack.c.l.b16 %v112
    %v326 = vunpack.c.l.b16 %v113
    %v327 = vunpack.c.l.b16 %v114
    %v328 = vunpack.c.l.b16 %v115
    %v329 = vunpack.c.l.b16 %v116
    %v330 = vunpack.c.l.b16 %v117
    %v331 = vunpack.c.l.b16 %v118
    %v332 = vunpack.c.l.b16 %v119
    %v333 = vunpack.c.l.b16 %v120
    %v334 = vunpack.c.l.b16 %v121
    %v335 = vunpack.c.l.b16 %v122
    %v336 = vunpack.c.l.b16 %v123
    %v337 = vunpack.c.l.b16 %v124
    %v338 = vunpack.c.l.b16 %v125
    %v339 = vunpack.c.l.b16 %v126
    %v340 = vunpack.c.l.b16 %v127
    %v341 = vunpack.c.l.b16 %v128
    %v342 = vunpack.c.l.b16 %v129
    %v343 = vunpack.c.l.b16 %v130
    %v344 = vunpack.c.l.b16 %v131
    %v345 = vunpack.c.l.b16 %v132
    %v346 = vunpack.c.l.b16 %v133
    %v347 = vunpack.c.l.b16 %v134
    %v348 = vunpack.c.l.b16 %v135
    %v349 = vunpack.c.l.b16 %v136
    %v350 = vunpack.c.l.b16 %v137
    %v351 = vunpack.c.l.b16 %v138
    %v352 = vunpack.c.l.b16 %v139
    %v353 = vunpack.c.l.b16 %v140
    %v354 = vunpack.c.l.b16 %v141
    %v355 = vunpack.c.l.b16 %v142
    %v356 = vunpack.c.l.b16 %v143
    %v357 = vunpack.c.l.b16 %v144
    %v358 = vunpack.c.l.b16 %v145
    %v359 = vunpack.c.l.b16 %v146
    %v360 = vunpack.c.l.b16 %v147
    %v361 = vunpack.c.l.b16 %v148
    %v362 = vunpack.c.l.b16 %v149
    %v363 = vunpack.c.l.b16 %v150
    %v364 = vunpack.c.l.b16 %v151
    %v365 = vunpack.c.l.b16 %v152
    %v366 = vunpack.c.l.b16 %v153
    %v367 = vunpack.c.l.b16 %v154
    %v368 = vunpack.c.l.b16 %v155
    %v369 = vunpack.c.l.b16 %v156
    %v370 = vunpack.c.l.b16 %v157
    %v371 = vunpack.c.l.b16 %v158
    %v372 = vunpack.c.l.b16 %v159
    %v373 = vunpack.c.l.b16 %v160
    %v374 = vunpack.c.l.b16 %v161
    %v375 = vunpack.c.l.b16 %v162
    %v376 = vpack.c.b16 %v281, %v280
    %v377 = vpack.c.b16 %v283, %v282
    %v378 = vpack.c.b16 %v285, %v284
    %v379 = vpack.c.b16 %v287, %v286
    %v380 = vpack.c.b16 %v289, %v288
    %v381 = vpack.c.b16 %v291, %v290
    %v382 = vpack.c.b16 %v293, %v292
    %v383 = vpack.c.b16 %v295, %v294
    %v384 = vpack.c.b16 %v297, %v296
    %v385 = vpack.c.b16 %v299, %v298
    %v386 = vpack.c.b16 %v301, %v300
    %v387 = vpack.c.b16 %v303, %v302
    %v388 = vpack.c.b16 %v305, %v304
    %v389 = vpack.c.b16 %v307, %v306
    %v390 = vpack.c.b16 %v309, %v308
    %v391 = vpack.c.b16 %v311, %v310
    %v392 = vpack.c.b16 %v313, %v312
    %v393 = vpack.c.b16 %v315, %v314
    %v394 = vpack.c.b16 %v317, %v316
    %v395 = vpack.c.b16 %v319, %v318
    %v396 = vpack.c.b16 %v321, %v320
    %v397 = vpack.c.b16 %v323, %v322
    %v398 = vpack.c.b16 %v325, %v324
    %v399 = vpack.c.b16 %v327, %v326
    %v400 = vpack.c.b16 %v329, %v328
    %v401 = vpack.c.b16 %v331, %v330
    %v402 = vpack.c.b16 %v333, %v332
    %v403 = vpack.c.b16 %v335, %v334
    %v404 = vpack.c.b16 %v337, %v336
    %v405 = vpack.c.b16 %v339, %v338
    %v406 = vpack.c.b16 %v341, %v340
    %v407 = vpack.c.b16 %v343, %v342
    %v408 = vpack.c.b16 %v345, %v344
    %v409 = vpack.c.b16 %v347, %v346
    %v410 = vpack.c.b16 %v349, %v348
    %v411 = vpack.c.b16 %v351, %v350
    %v412 = vpack.c.b16 %v353, %v352
    %v413 = vpack.c.b16 %v355, %v354
    %v414 = vpack.c.b16 %v357, %v356
    %v415 = vpack.c.b16 %v359, %v358
    %v416 = vpack.c.b16 %v361, %v360
    %v417 = vpack.c.b16 %v363, %v362
    %v418 = vpack.c.b16 %v365, %v364
    %v419 = vpack.c.b16 %v367, %v366
    %v420 = vpack.c.b16 %v369, %v368
    %v421 = vpack.c.b16 %v371, %v370
    %v422 = vpack.c.b16 %v373, %v372
    %v423 = vpack.c.b16 %v375, %v374
    %472 = vmatprep.subr.bf16.mxu0 0
    %473 = vmatpush1.bf16.msra.mxu0 %v383
    %474 = vmatprep.subr.bf16.mxu0 0
    %475 = vmatpush1.bf16.msra.mxu0 %v382
    %476 = vmatprep.subr.bf16.mxu0 0
    %477 = vmatpush1.bf16.msra.mxu0 %v381
    %478 = vmatprep.subr.bf16.mxu0 0
    %479 = vmatpush1.bf16.msra.mxu0 %v380
    %480 = vmatprep.subr.bf16.mxu0 0
    %481 = vmatpush1.bf16.msra.mxu0 %v379
    %482 = vmatprep.subr.bf16.mxu0 0
    %483 = vmatpush1.bf16.msra.mxu0 %v378
    %484 = vmatprep.subr.bf16.mxu0 0
    %485 = vmatpush1.bf16.msra.mxu0 %v377
    %486 = vmatprep.subr.bf16.mxu0 0
    %487 = vmatpush1.bf16.msra.mxu0 %v376
    %488 = vmatprep.subr.bf16.mxu0 0
    %489 = vmatpush2.bf16.msra.mxu0 %v391
    %490 = vmatprep.subr.bf16.mxu0 0
    %491 = vmatpush2.bf16.msra.mxu0 %v390
    %492 = vmatprep.subr.bf16.mxu0 0
    %493 = vmatpush2.bf16.msra.mxu0 %v389
    %494 = vmatprep.subr.bf16.mxu0 0
    %495 = vmatpush2.bf16.msra.mxu0 %v388
    %496 = vmatprep.subr.bf16.mxu0 0
    %497 = vmatpush2.bf16.msra.mxu0 %v387
    %498 = vmatprep.subr.bf16.mxu0 0
    %499 = vmatpush2.bf16.msra.mxu0 %v386
    %500 = vmatprep.subr.bf16.mxu0 0
    %501 = vmatpush2.bf16.msra.mxu0 %v385
    %502 = vmatprep.subr.bf16.mxu0 0
    %503 = vmatpush2.bf16.msra.mxu0 %v384
    %504 = vmatprep.mubr.bf16.mxu0 %v173
    %505 = vmatmul.mubr.bf16.gmra.mxu0 %v172
    %v506 = vpop.f32.mrf.mxu0
    %v507 = vadd.f32 0.0, %v506
    %v508 = vpop.f32.mrf.mxu0
    %v509 = vpop.f32.mrf.mxu0
    %v510 = vpop.f32.mrf.mxu0
    %511 = vdwg.mxu0
    %512 = vmatprep.subr.bf16.mxu0 0
    %513 = vmatpush1.bf16.msra.mxu0 %v399
    %514 = vmatprep.subr.bf16.mxu0 0
    %515 = vmatpush1.bf16.msra.mxu0 %v398
    %516 = vmatprep.subr.bf16.mxu0 0
    %517 = vmatpush1.bf16.msra.mxu0 %v397
    %518 = vmatprep.subr.bf16.mxu0 0
    %519 = vmatpush1.bf16.msra.mxu0 %v396
    %520 = vmatprep.subr.bf16.mxu0 0
    %521 = vmatpush1.bf16.msra.mxu0 %v395
    %522 = vmatprep.subr.bf16.mxu0 0
    %523 = vmatpush1.bf16.msra.mxu0 %v394
    %524 = vmatprep.subr.bf16.mxu0 0
    %525 = vmatpush1.bf16.msra.mxu0 %v393
    %526 = vmatprep.subr.bf16.mxu0 0
    %527 = vmatpush1.bf16.msra.mxu0 %v392
    %528 = vmatprep.subr.bf16.mxu0 0
    %529 = vmatpush2.bf16.msra.mxu0 %v407
    %530 = vmatprep.subr.bf16.mxu0 0
    %531 = vmatpush2.bf16.msra.mxu0 %v406
    %532 = vmatprep.subr.bf16.mxu0 0
    %533 = vmatpush2.bf16.msra.mxu0 %v405
    %534 = vmatprep.subr.bf16.mxu0 0
    %535 = vmatpush2.bf16.msra.mxu0 %v404
    %536 = vmatprep.subr.bf16.mxu0 0
    %537 = vmatpush2.bf16.msra.mxu0 %v403
    %538 = vmatprep.subr.bf16.mxu0 0
    %539 = vmatpush2.bf16.msra.mxu0 %v402
    %540 = vmatprep.subr.bf16.mxu0 0
    %541 = vmatpush2.bf16.msra.mxu0 %v401
    %542 = vmatprep.subr.bf16.mxu0 0
    %543 = vmatpush2.bf16.msra.mxu0 %v400
    %544 = vmatprep.mubr.bf16.mxu0 %v175
    %545 = vmatmul.mubr.bf16.gmra.mxu0 %v174
    %v546 = vpop.f32.mrf.mxu0
    %v547 = vadd.f32 %v507, %v546
    %v548 = vpop.f32.mrf.mxu0
    %v549 = vpop.f32.mrf.mxu0
    %v550 = vpop.f32.mrf.mxu0
    %551 = vdwg.mxu0
    %552 = vmatprep.subr.bf16.mxu0 0
    %553 = vmatpush1.bf16.msra.mxu0 %v415
    %554 = vmatprep.subr.bf16.mxu0 0
    %555 = vmatpush1.bf16.msra.mxu0 %v414
    %556 = vmatprep.subr.bf16.mxu0 0
    %557 = vmatpush1.bf16.msra.mxu0 %v413
    %558 = vmatprep.subr.bf16.mxu0 0
    %559 = vmatpush1.bf16.msra.mxu0 %v412
    %560 = vmatprep.subr.bf16.mxu0 0
    %561 = vmatpush1.bf16.msra.mxu0 %v411
    %562 = vmatprep.subr.bf16.mxu0 0
    %563 = vmatpush1.bf16.msra.mxu0 %v410
    %564 = vmatprep.subr.bf16.mxu0 0
    %565 = vmatpush1.bf16.msra.mxu0 %v409
    %566 = vmatprep.subr.bf16.mxu0 0
    %567 = vmatpush1.bf16.msra.mxu0 %v408
    %568 = vmatprep.subr.bf16.mxu0 0
    %569 = vmatpush2.bf16.msra.mxu0 %v423
    %570 = vmatprep.subr.bf16.mxu0 0
    %571 = vmatpush2.bf16.msra.mxu0 %v422
    %572 = vmatprep.subr.bf16.mxu0 0
    %573 = vmatpush2.bf16.msra.mxu0 %v421
    %574 = vmatprep.subr.bf16.mxu0 0
    %575 = vmatpush2.bf16.msra.mxu0 %v420
    %576 = vmatprep.subr.bf16.mxu0 0
    %577 = vmatpush2.bf16.msra.mxu0 %v419
    %578 = vmatprep.subr.bf16.mxu0 0
    %579 = vmatpush2.bf16.msra.mxu0 %v418
    %580 = vmatprep.subr.bf16.mxu0 0
    %581 = vmatpush2.bf16.msra.mxu0 %v417
    %582 = vmatprep.subr.bf16.mxu0 0
    %583 = vmatpush2.bf16.msra.mxu0 %v416
    %584 = vmatprep.mubr.bf16.mxu0 %v177
    %585 = vmatmul.mubr.bf16.gmra.mxu0 %v176
    %v586 = vpop.f32.mrf.mxu0
    %v587 = vadd.f32 %v547, %v586
    %v588 = vpop.f32.mrf.mxu0
    %v589 = vpop.f32.mrf.mxu0
    %v590 = vpop.f32.mrf.mxu0
    %591 = vdwg.mxu0
    %v592 = vmul.f32 %v587, %v587
    %593 = vadd.xlane.f32.xlu0 %v592
    %v594 = vpop.xlane.xlu0 %593
    %v595 = vadd.f32 %v594, 1e-12
    %v596 = vrsqrt.pop %v595
    %v597 = vmul.f32 %v587, %v596
    %vm598 = vcmask 1041408
    %v599 = vsel %vm598, %v597, 0.0
    %v600 = vrot.slane %v599, 4
    %v601 = vadd.f32 %v599, %v600
    %v602 = vrot.slane %v601, 2
    %v603 = vadd.f32 %v601, %v602
    %v604 = vrot.slane %v603, 1
    %v605 = vadd.f32 %v603, %v604
    %v607 = vrot.slane %v597, 2
    %v609 = vsel %vm598, %v607, 0.0
    %v610 = vrot.slane %v609, 4
    %v611 = vadd.f32 %v609, %v610
    %v612 = vrot.slane %v611, 2
    %v613 = vadd.f32 %v611, %v612
    %v614 = vrot.slane %v613, 1
    %v615 = vadd.f32 %v613, %v614
    %v616 = vrot.slane %v597, 4
    %v618 = vsel %vm598, %v616, 0.0
    %v619 = vrot.slane %v618, 4
    %v620 = vadd.f32 %v618, %v619
    %v621 = vrot.slane %v620, 2
    %v622 = vadd.f32 %v620, %v621
    %v623 = vrot.slane %v622, 1
    %v624 = vadd.f32 %v622, %v623
    %v625 = vrot.slane %v597, 6
    %v627 = vsel %vm598, %v625, 0.0
    %v628 = vrot.slane %v627, 4
    %v629 = vadd.f32 %v627, %v628
    %v630 = vrot.slane %v629, 2
    %v631 = vadd.f32 %v629, %v630
    %v632 = vrot.slane %v631, 1
    %v633 = vadd.f32 %v631, %v632
    %vm634 = vcmask 1040384
    %v635 = vsel %vm634, %v605, %v615
    %v636 = vsel %vm598, %v635, %v624
    %vm637 = vcmask 1042432
    %v638 = vsel %vm637, %v636, %v633
    %v639 = vld [vmem:[%s2] sm:$0x1]
    %v640 = vld [vmem:[#allocation8] sm:$0xf]
    %v641 = vld [vmem:[#allocation8 + $0x4] sm:$0xf]
    %v642 = vld [vmem:[#allocation8 + $0x8] sm:$0xf]
    %v643 = vld [vmem:[#allocation8 + $0xc] sm:$0xf]
    %v648 = vunpack.c.l.b16 %v640
    %v649 = vunpack.c.l.b16 %v641
    %v650 = vunpack.c.l.b16 %v642
    %v651 = vunpack.c.l.b16 %v643
    %v652 = vpack.c.b16 %v649, %v648
    %v653 = vpack.c.b16 %v651, %v650
    %vm656 = vcmask 261120
    %v658 = vsel %vm656, %v639, 0
    %660 = vmatprep.subr.bf16.mxu0 0
    %661 = vmatpush1.bf16.msra.mxu0 0
    %662 = vmatprep.subr.bf16.mxu0 0
    %663 = vmatpush1.bf16.msra.mxu0 0
    %664 = vmatprep.subr.bf16.mxu0 0
    %665 = vmatpush1.bf16.msra.mxu0 0
    %666 = vmatprep.subr.bf16.mxu0 0
    %667 = vmatpush1.bf16.msra.mxu0 0
    %668 = vmatprep.subr.bf16.mxu0 0
    %669 = vmatpush1.bf16.msra.mxu0 0
    %670 = vmatprep.subr.bf16.mxu0 0
    %671 = vmatpush1.bf16.msra.mxu0 0
    %672 = vmatprep.subr.bf16.mxu0 0
    %673 = vmatpush1.bf16.msra.mxu0 %v653
    %674 = vmatprep.subr.bf16.mxu0 0
    %675 = vmatpush1.bf16.msra.mxu0 %v652
    %676 = vmatprep.subr.bf16.mxu0 0
    %677 = vmatpush2.bf16.msra.mxu0 0
    %678 = vmatprep.subr.bf16.mxu0 0
    %679 = vmatpush2.bf16.msra.mxu0 0
    %680 = vmatprep.subr.bf16.mxu0 0
    %681 = vmatpush2.bf16.msra.mxu0 0
    %682 = vmatprep.subr.bf16.mxu0 0
    %683 = vmatpush2.bf16.msra.mxu0 0
    %684 = vmatprep.subr.bf16.mxu0 0
    %685 = vmatpush2.bf16.msra.mxu0 0
    %686 = vmatprep.subr.bf16.mxu0 0
    %687 = vmatpush2.bf16.msra.mxu0 0
    %688 = vmatprep.subr.bf16.mxu0 0
    %689 = vmatpush2.bf16.msra.mxu0 0
    %690 = vmatprep.subr.bf16.mxu0 0
    %691 = vmatpush2.bf16.msra.mxu0 0
    %692 = vmatprep.mubr.bf16.mxu0 0
    %693 = vmatmul.mubr.bf16.gmra.mxu0 %v658
    %v694 = vpop.f32.mrf.mxu0
    %v695 = vadd.f32 0.0, %v694
    %v696 = vpop.f32.mrf.mxu0
    %v697 = vpop.f32.mrf.mxu0
    %v698 = vpop.f32.mrf.mxu0
    %699 = vdwg.mxu0
    %v700 = vmul.f32 %v695, %v695
    %v701 = vsel %vm598, %v700, 0.0
    %702 = vadd.xlane.f32.xlu0 %v701
    %v703 = vpop.xlane.xlu0 %702
    %v704 = vadd.f32 %v703, 1e-12
    %v705 = vrsqrt.pop %v704
    %v706 = vmul.f32 %v695, %v705
    %v707 = vpack.c.bf16 %v706, %v706
    %v708 = vpack.c.bf16 %v638, %v638
    %709 = vmatprep.subr.bf16.mxu0 0
    %710 = vmatpush1.bf16.xpose.msra.mxu0 0
    %711 = vmatprep.subr.bf16.mxu0 0
    %712 = vmatpush1.bf16.xpose.msra.mxu0 0
    %713 = vmatprep.subr.bf16.mxu0 0
    %714 = vmatpush1.bf16.xpose.msra.mxu0 0
    %715 = vmatprep.subr.bf16.mxu0 0
    %716 = vmatpush1.bf16.xpose.msra.mxu0 0
    %717 = vmatprep.subr.bf16.mxu0 0
    %718 = vmatpush1.bf16.xpose.msra.mxu0 0
    %719 = vmatprep.subr.bf16.mxu0 0
    %720 = vmatpush1.bf16.xpose.msra.mxu0 0
    %721 = vmatprep.subr.bf16.mxu0 0
    %722 = vmatpush1.bf16.xpose.msra.mxu0 0
    %723 = vmatprep.subr.bf16.mxu0 0
    %724 = vmatpush1.bf16.xpose.msra.mxu0 %v708
    %725 = vmatprep.subr.bf16.mxu0 0
    %726 = vmatpush2.bf16.xpose.msra.mxu0 0
    %727 = vmatprep.subr.bf16.mxu0 0
    %728 = vmatpush2.bf16.xpose.msra.mxu0 0
    %729 = vmatprep.subr.bf16.mxu0 0
    %730 = vmatpush2.bf16.xpose.msra.mxu0 0
    %731 = vmatprep.subr.bf16.mxu0 0
    %732 = vmatpush2.bf16.xpose.msra.mxu0 0
    %733 = vmatprep.subr.bf16.mxu0 0
    %734 = vmatpush2.bf16.xpose.msra.mxu0 0
    %735 = vmatprep.subr.bf16.mxu0 0
    %736 = vmatpush2.bf16.xpose.msra.mxu0 0
    %737 = vmatprep.subr.bf16.mxu0 0
    %738 = vmatpush2.bf16.xpose.msra.mxu0 0
    %739 = vmatprep.subr.bf16.mxu0 0
    %740 = vmatpush2.bf16.xpose.msra.mxu0 0
    %741 = vmatprep.mubr.bf16.mxu0 0
    %742 = vmatmul.mubr.bf16.gmra.mxu0 %v707
    %v743 = vpop.f32.mrf.mxu0
    %v744 = vadd.f32 0.0, %v743
    %v745 = vpop.f32.mrf.mxu0
    %v746 = vpop.f32.mrf.mxu0
    %v747 = vpop.f32.mrf.mxu0
    %748 = vdwg.mxu0
    %v749 = vmul.f32 %v744, 7.142857
    %vm750 = vcmask 25600
    %751 = vst.msk [vmem:[#allocation9] sm:$0x3] %vm750, %v749
    %v752 = vsel %vm750, %v749, -inf
    %753 = vmax.xlane.f32.xlu0 %v752
    %v754 = vpop.xlane.xlu0 %753
    %v755 = vsub.f32 %v749, %v754
    %v756 = vmul.f32 %v755, 1.442695
    %v757 = vpow.pop %v756
    %v758 = vsel %vm750, %v757, 0.0
    %759 = vadd.xlane.f32.xlu0 %v758
    %v760 = vpop.xlane.xlu0 %759
    %v761 = vlog2.pop %v760
    %v762 = vmul.f32 %v761, 0.6931472
    %v763 = vadd.f32 %v754, %v762
    %v764 = vlaneseq
    %v765 = vand.u32 %v764, 127
    %v766 = vld [vmem:[%s4] sm:$0x3]
    %767 = vset.pattern.permute.xlu0 0
    %768 = vperm.xlu0 %767, %v766
    %v769 = vpop.permute.xlu0 %768
    %vm770 = vcmp.eq.s32.totalorder %v765, %v769
    %v771 = vsel %vm770, %v749, 0.0
    %v772 = vsel %vm750, %v771, 0.0
    %773 = vadd.xlane.f32.xlu0 %v772
    %v774 = vpop.xlane.xlu0 %773
    %v775 = vsub.f32 %v763, %v774
    %vm776 = vcmask 1024
    %v777 = vsel %vm776, %v775, 0.0
    %778 = vadd.xlane.f32.xlu0 %v777
    %v779 = vpop.xlane.xlu0 %778
    %v780 = vrot.slane %v779, 4
    %v781 = vadd.f32 %v779, %v780
    %v782 = vrot.slane %v781, 2
    %v783 = vadd.f32 %v781, %v782
    %v784 = vrot.slane %v783, 1
    %v785 = vadd.f32 %v783, %v784
    %s786 = vtos %v785
    %v787 = vrcp.pop 2.0
    %s788 = vtos %v787
    %s789 = smul.f32 %s786, %s788
    %s790 = scalar_lea.smem [#allocation10], 0
    %791 = sst [smem:[%s790]] %s789
    // Predicated region
    $region34: #{tpu_custom_call.1} parent=1 // pred_check
      _
    $region35: #{tpu_custom_call.1} parent=1 // pred_check_branch
      %793 = sbr.rel (0) target = $region37
    $region36: #{tpu_custom_call.1} parent=1 // pred_region
      %s795 = ssub.s32 32, 32
      %796 = vsyncadd [#allocation4], %s795
      %s798 = sshll.u32 [#allocation9], 4
      %s799 = int_to_ptr.vmem [resolvable:$true] %s798
      %801 = dma.vmem_to_hbm [thread:$0]  %s799, 32, %s5, [#allocation4]
    $region37: #{tpu_custom_call.1} parent=1 // pred_fallthru
      _
    // Predicated region
    $region38: #{tpu_custom_call.1} parent=1 // pred_check
      _
    $region39: #{tpu_custom_call.1} parent=1 // pred_check_branch
      %803 = sbr.rel (0) target = $region41
    $region40: #{tpu_custom_call.1} parent=1 // pred_region
      %s805 = ssub.s32 16, 16
      %806 = vsyncadd [#allocation5], %s805
      %809 = dma.smem_to_hbm [#allocation10], 16, %s6, [#allocation5]
    $region41: #{tpu_custom_call.1} parent=1 // pred_fallthru
      _
    // Predicated region
    $region42: #{tpu_custom_call.1} parent=1 // pred_check
      _
    $region43: #{tpu_custom_call.1} parent=1 // pred_check_branch
      %811 = sbr.rel (0) target = $region45
    $region44: #{tpu_custom_call.1} parent=1 // pred_region
      %812 = dma.done [#allocation4], 32
    $region45: #{tpu_custom_call.1} parent=1 // pred_fallthru
      _
    // Predicated region
    $region46: #{tpu_custom_call.1} parent=1 // pred_check
      _
    $region47: #{tpu_custom_call.1} parent=1 // pred_check_branch
      %814 = sbr.rel (0) target = $region49
    $region48: #{tpu_custom_call.1} parent=1 // pred_region
      %815 = dma.done [#allocation5], 16
    $region49: #{tpu_custom_call.1} parent=1 // pred_fallthru
      _
    %816 = sfence
    %817 = vsyncpa [#allocation3], 1
    %818 = vsyncpa [#allocation7], 1
    %819 = vsyncpa [#allocation4], 1
    %820 = vsyncpa [#allocation5], 1

</llo_original>
